<compile_context>
chip_gen: v5e
topology: v5e:2x2
jax: 0.10.0
libtpu: 0.0.40
codegen_flags: <defaults>
</compile_context>

<pallas_src>
import jax
import jax.numpy as jnp
from jax.experimental import pallas as pl
from jax.experimental.pallas import tpu as pltpu

LANE = 128   # vreg lane width
SUB = 8      # f32 sublane count

_VMEM = pl.BlockSpec(memory_space=pltpu.MemorySpace.VMEM)


def _round_up(v, m):
    return (v + m - 1) // m * m


def _pick_edge_tile(e_pad):
    for t in (512, 256, 128, 64, 32, 16, 8):
        if e_pad % t == 0:
            return t
    return e_pad


# ---------------------------------------------------------------------------
# Kernel 1: fused 3-layer GCN (A_hat resident in VMEM across layers)
# ---------------------------------------------------------------------------

def _gcn_layer(a_bf16, h_in, w, b, *, relu, residual, project_first):
    """One GCNConv: A_hat @ (h @ W) + b, with matmul order chosen statically."""
    if project_first:                       # project to the (smaller) out dim first
        t = jnp.dot(h_in, w, preferred_element_type=jnp.float32)
        out = jnp.dot(a_bf16, t.astype(jnp.bfloat16),
                      preferred_element_type=jnp.float32)
    else:                                   # aggregate the (smaller) in dim first
        t = jnp.dot(a_bf16, h_in.astype(jnp.bfloat16),
                    preferred_element_type=jnp.float32)
        out = jnp.dot(t, w, preferred_element_type=jnp.float32)
    out = out + b
    if relu:
        out = jnp.maximum(out, 0.0)
    if residual:
        out = out + h_in                    # residual added AFTER the relu (as in torch)
    return out


def _make_gcn3_kernel(order):
    def kernel(a_ref, x_ref, w0_ref, b0_ref, w1_ref, b1_ref, w2_ref, b2_ref, h_ref):
        a = a_ref[...]                                          # (Np, Np) bf16
        # initial_conv -> relu     (dropout: eval-mode identity)
        h0 = _gcn_layer(a, x_ref[...], w0_ref[...], b0_ref[...],
                        relu=True, residual=False, project_first=order[0])
        # residual_conv -> relu -> + initial   (dropout: identity)
        h1 = _gcn_layer(a, h0, w1_ref[...], b1_ref[...],
                        relu=True, residual=True, project_first=order[1])
        # final_conv (no activation)
        h2 = _gcn_layer(a, h1, w2_ref[...], b2_ref[...],
                        relu=False, residual=False, project_first=order[2])
        h_ref[...] = h2.astype(h_ref.dtype)
    return kernel


def fused_gcn3(a_hat_bf16, x_pad, p):
    dims = p["dims"]
    n_pad = x_pad.shape[0]
    c_pad = p["w2"].shape[1]
    order = (dims["H"] <= dims["F"],        # layer0: project first iff out <= in
             True,                          # layer1: square
             dims["C"] <= dims["H"])        # layer2: C <= H -> project first
    return pl.pallas_call(
        _make_gcn3_kernel(order),
        out_shape=jax.ShapeDtypeStruct((n_pad, c_pad), jnp.float32),
        in_specs=[_VMEM] * 8,
        out_specs=_VMEM,
        compiler_params=pltpu.CompilerParams(vmem_limit_bytes=32 * 1024 * 1024),
    )(a_hat_bf16, x_pad, p["w0"], p["b0"], p["w1"], p["b1"], p["w2"], p["b2"])


# ---------------------------------------------------------------------------
# Kernel 2: fused edge gather + fc1 + relu + fc2 + log_softmax (edge-tiled)
# ---------------------------------------------------------------------------

def _make_edge_head_kernel(num_classes):
    def kernel(gs_ref, gd_ref, h_ref, w1s_ref, w1d_ref, b1_ref,
               w2_ref, b2_ref, o_ref):
        h = h_ref[...]                                          # (Np, Cp) f32
        # in-kernel row gather as one-hot MXU matmuls (exact in f32)
        xs = jnp.dot(gs_ref[...], h, preferred_element_type=jnp.float32)  # (TE, Cp)
        xd = jnp.dot(gd_ref[...], h, preferred_element_type=jnp.float32)
        # fc1 on concat([xs, xd]) without the lane concat: split weight halves.
        z = (jnp.dot(xs, w1s_ref[...], preferred_element_type=jnp.float32)
             + jnp.dot(xd, w1d_ref[...], preferred_element_type=jnp.float32)
             + b1_ref[...])
        z = jnp.maximum(z, 0.0)
        logits = jnp.dot(z, w2_ref[...], preferred_element_type=jnp.float32) + b2_ref[...]
        # log_softmax over the real classes only (mask out the padded lanes)
        lane = jax.lax.broadcasted_iota(jnp.int32, logits.shape, 1)
        logits = jnp.where(lane < num_classes, logits, jnp.float32(-1e30))
        m = jnp.max(logits, axis=1, keepdims=True)
        zc = logits - m
        lse = jnp.log(jnp.sum(jnp.exp(zc), axis=1, keepdims=True))
        o_ref[...] = (zc - lse).astype(o_ref.dtype)
    return kernel


def edge_head(gs, gd, h_pad, p):
    e_pad, n_pad = gs.shape
    c_pad = h_pad.shape[1]
    te = _pick_edge_tile(e_pad)
    full = lambda i: (0, 0)
    row_tile = lambda i: (i, 0)
    return pl.pallas_call(
        _make_edge_head_kernel(p["dims"]["C"]),
        out_shape=jax.ShapeDtypeStruct((e_pad, c_pad), jnp.float32),
        grid=(e_pad // te,),
        in_specs=[
            pl.BlockSpec((te, n_pad), row_tile),        # one-hot src rows
            pl.BlockSpec((te, n_pad), row_tile),        # one-hot dst rows
            pl.BlockSpec((n_pad, c_pad), full),         # node features (resident)
            pl.BlockSpec((c_pad, c_pad), full),         # fc1 src half
            pl.BlockSpec((c_pad, c_pad), full),         # fc1 dst half
            pl.BlockSpec((1, c_pad), full),             # fc1 bias
            pl.BlockSpec((c_pad, c_pad), full),         # fc2 weight
            pl.BlockSpec((1, c_pad), full),             # fc2 bias
        ],
        out_specs=pl.BlockSpec((te, c_pad), row_tile),  # lane-dense output slab
        compiler_params=pltpu.CompilerParams(
            dimension_semantics=("parallel",),
            vmem_limit_bytes=32 * 1024 * 1024),
    )(gs, gd, h_pad, p["fc1_ws"], p["fc1_wd"], p["fc1_b"], p["fc2_w"], p["fc2_b"])


# ---------------------------------------------------------------------------
# XLA glue: normalized adjacency, padding, one-hot gather matrices
# ---------------------------------------------------------------------------

def build_norm_adj(edge_index, num_nodes, n_pad):
    """Dense D^-1/2 (A + I_remaining) D^-1/2, rows = dst (PyG GCNConv convention)."""
    src, dst = edge_index[0], edge_index[1]
    a = jnp.zeros((num_nodes, num_nodes), jnp.float32).at[dst, src].add(1.0)
    # add_remaining_self_loops: only add a self-loop where one is missing
    diag = jnp.diagonal(a)
    a = a + jnp.diag(jnp.where(diag == 0, 1.0, 0.0))
    deg = a.sum(axis=1)
    d_inv_sqrt = jnp.where(deg > 0, jax.lax.rsqrt(deg), 0.0)
    a_hat = d_inv_sqrt[:, None] * a * d_inv_sqrt[None, :]
    a_hat = jnp.pad(a_hat, ((0, n_pad - num_nodes), (0, n_pad - num_nodes)))
    return a_hat.astype(jnp.bfloat16)       # bf16 feed for the MXU (f32 accumulation)


def build_gather_mats(edge_index, n_pad, e_pad):
    e = edge_index.shape[1]
    pad = jnp.full((e_pad - e,), n_pad, dtype=edge_index.dtype)   # out-of-range -> zero rows
    src = jnp.concatenate([edge_index[0], pad])
    dst = jnp.concatenate([edge_index[1], pad])
    gs = jax.nn.one_hot(src, n_pad, dtype=jnp.float32)
    gd = jax.nn.one_hot(dst, n_pad, dtype=jnp.float32)
    return gs, gd


def residual_gcn_forward(params, x, edge_index):
    dims = params["dims"]
    n, f = x.shape
    e = edge_index.shape[1]
    n_pad = _round_up(n, SUB)
    e_pad = _round_up(e, SUB)
    f_pad = params["w0"].shape[0]

    a_hat = build_norm_adj(edge_index, n, n_pad)                     # (Np, Np) bf16
    x_pad = jnp.pad(x.astype(jnp.float32), ((0, n_pad - n), (0, f_pad - f)))
    gs, gd = build_gather_mats(edge_index, n_pad, e_pad)             # (Ep, Np) f32

    h = fused_gcn3(a_hat, x_pad, params)                             # (Np, Cp) f32
    out = edge_head(gs, gd, h, params)                               # (Ep, Cp) f32
    return out[:e, :dims["C"]]


# ---------------------------------------------------------------------------
# Parameter init: (in, out) layout, pre-padded to lane multiples, fc1 pre-split
# ---------------------------------------------------------------------------

def init_params(key, num_features, num_classes, hidden_dim):
    f_pad = _round_up(num_features, LANE)
    h_pad = _round_up(hidden_dim, LANE)
    c_pad = _round_up(num_classes, LANE)
    ks = jax.random.split(key, 10)

    def glorot(k, fan_in, fan_out):
        lim = (6.0 / (fan_in + fan_out)) ** 0.5
        return jax.random.uniform(k, (fan_in, fan_out), jnp.float32, -lim, lim)

    def pad_w(w, r, c):
        return jnp.pad(w, ((0, r - w.shape[0]), (0, c - w.shape[1])))

    def pad_b(b, c):
        return jnp.pad(b, (0, c - b.shape[0])).reshape(1, c)

    w0 = glorot(ks[0], num_features, hidden_dim)
    b0 = 0.01 * jax.random.normal(ks[1], (hidden_dim,), jnp.float32)
    w1 = glorot(ks[2], hidden_dim, hidden_dim)
    b1 = 0.01 * jax.random.normal(ks[3], (hidden_dim,), jnp.float32)
    w2 = glorot(ks[4], hidden_dim, num_classes)
    b2 = 0.01 * jax.random.normal(ks[5], (num_classes,), jnp.float32)
    fc1 = glorot(ks[6], 2 * num_classes, num_classes)      # (2C, C) = (in, out)
    fc1_b = 0.01 * jax.random.normal(ks[7], (num_classes,), jnp.float32)
    fc2 = glorot(ks[8], num_classes, num_classes)          # (C, C)
    fc2_b = 0.01 * jax.random.normal(ks[9], (num_classes,), jnp.float32)

    return {
        "dims": {"F": num_features, "H": hidden_dim, "C": num_classes},
        "w0": pad_w(w0, f_pad, h_pad), "b0": pad_b(b0, h_pad),
        "w1": pad_w(w1, h_pad, h_pad), "b1": pad_b(b1, h_pad),
        "w2": pad_w(w2, h_pad, c_pad), "b2": pad_b(b2, c_pad),
        "fc1_ws": pad_w(fc1[:num_classes], c_pad, c_pad),   # multiplies x[src]
        "fc1_wd": pad_w(fc1[num_classes:], c_pad, c_pad),   # multiplies x[dst]
        "fc1_b": pad_b(fc1_b, c_pad),
        "fc2_w": pad_w(fc2, c_pad, c_pad), "fc2_b": pad_b(fc2_b, c_pad),
    }


# ---------------------------------------------------------------------------

if __name__ == "__main__":
    NUM_NODES = 16
    NUM_FEATURES = 8
    HIDDEN_DIM = 16
    NUM_CLASSES = 4
    NUM_EDGES = 32

    key = jax.random.PRNGKey(0)
    k_x, k_e, k_p = jax.random.split(key, 3)

    x = jax.random.normal(k_x, (NUM_NODES, NUM_FEATURES), jnp.float32)
    edge_index = jax.random.randint(k_e, (2, NUM_EDGES), 0, NUM_NODES, jnp.int32)
    params = init_params(k_p, NUM_FEATURES, NUM_CLASSES, HIDDEN_DIM)

    out = residual_gcn_forward(params, x, edge_index)   # (NUM_EDGES, NUM_CLASSES)
    out = jax.block_until_ready(out)

    assert out.shape == (NUM_EDGES, NUM_CLASSES)
    assert bool(jnp.all(jnp.isfinite(out)))
    # rows of log_softmax must exp-sum to 1
    assert bool(jnp.all(jnp.abs(jnp.exp(out).sum(axis=1) - 1.0) < 1e-4))
    print("KERNEL_OK")
</pallas_src>

<mosaic_0001>
module attributes {stable_mosaic.version = 11 : i64} {
  func.func @kernel(%arg0: memref<16x16xbf16, #tpu.memory_space<vmem>>, %arg1: memref<16x128xf32, #tpu.memory_space<vmem>>, %arg2: memref<128x128xf32, #tpu.memory_space<vmem>>, %arg3: memref<1x128xf32, #tpu.memory_space<vmem>>, %arg4: memref<128x128xf32, #tpu.memory_space<vmem>>, %arg5: memref<1x128xf32, #tpu.memory_space<vmem>>, %arg6: memref<128x128xf32, #tpu.memory_space<vmem>>, %arg7: memref<1x128xf32, #tpu.memory_space<vmem>>, %arg8: memref<16x128xf32, #tpu.memory_space<vmem>>) attributes {dimension_semantics = [], scalar_prefetch = 0 : i64, scratch_operands = 0 : i64, tpu.core_type = #tpu.core_type<tc>} {
    %c0 = arith.constant 0 : index
    %c0_0 = arith.constant 0 : index
    %0 = vector.load %arg0[%c0, %c0_0] : memref<16x16xbf16, #tpu.memory_space<vmem>>, vector<16x16xbf16>
    %c0_1 = arith.constant 0 : index
    %c0_2 = arith.constant 0 : index
    %1 = vector.load %arg1[%c0_1, %c0_2] : memref<16x128xf32, #tpu.memory_space<vmem>>, vector<16x128xf32>
    %c0_3 = arith.constant 0 : index
    %c0_4 = arith.constant 0 : index
    %2 = vector.load %arg2[%c0_3, %c0_4] : memref<128x128xf32, #tpu.memory_space<vmem>>, vector<128x128xf32>
    %c0_5 = arith.constant 0 : index
    %c0_6 = arith.constant 0 : index
    %3 = vector.load %arg3[%c0_5, %c0_6] : memref<1x128xf32, #tpu.memory_space<vmem>>, vector<1x128xf32>
    %4 = arith.truncf %1 : vector<16x128xf32> to vector<16x128xbf16>
    %cst = arith.constant dense<0.000000e+00> : vector<16x128xf32>
    %5 = tpu.matmul %0, %4, %cst {dimension_numbers = #tpu.dot_dimension_numbers<[1], [0], [0], [1], [0, 0, 1, 1], [], []>} : vector<16x16xbf16>, vector<16x128xbf16>, vector<16x128xf32> -> vector<16x128xf32>
    %cst_7 = arith.constant dense<0.000000e+00> : vector<16x128xf32>
    %6 = tpu.matmul %5, %2, %cst_7 {dimension_numbers = #tpu.dot_dimension_numbers<[1], [0], [0], [1], [0, 0, 1, 1], [], []>} : vector<16x128xf32>, vector<128x128xf32>, vector<16x128xf32> -> vector<16x128xf32>
    %7 = vector.broadcast %3 : vector<1x128xf32> to vector<16x128xf32>
    %8 = arith.addf %6, %7 : vector<16x128xf32>
    %cst_8 = arith.constant 0.000000e+00 : f32
    %9 = vector.broadcast %cst_8 : f32 to vector<16x128xf32>
    %10 = arith.maximumf %8, %9 : vector<16x128xf32>
    %c0_9 = arith.constant 0 : index
    %c0_10 = arith.constant 0 : index
    %11 = vector.load %arg4[%c0_9, %c0_10] : memref<128x128xf32, #tpu.memory_space<vmem>>, vector<128x128xf32>
    %c0_11 = arith.constant 0 : index
    %c0_12 = arith.constant 0 : index
    %12 = vector.load %arg5[%c0_11, %c0_12] : memref<1x128xf32, #tpu.memory_space<vmem>>, vector<1x128xf32>
    %cst_13 = arith.constant dense<0.000000e+00> : vector<16x128xf32>
    %13 = tpu.matmul %10, %11, %cst_13 {dimension_numbers = #tpu.dot_dimension_numbers<[1], [0], [0], [1], [0, 0, 1, 1], [], []>} : vector<16x128xf32>, vector<128x128xf32>, vector<16x128xf32> -> vector<16x128xf32>
    %14 = arith.truncf %13 : vector<16x128xf32> to vector<16x128xbf16>
    %cst_14 = arith.constant dense<0.000000e+00> : vector<16x128xf32>
    %15 = tpu.matmul %0, %14, %cst_14 {dimension_numbers = #tpu.dot_dimension_numbers<[1], [0], [0], [1], [0, 0, 1, 1], [], []>} : vector<16x16xbf16>, vector<16x128xbf16>, vector<16x128xf32> -> vector<16x128xf32>
    %16 = vector.broadcast %12 : vector<1x128xf32> to vector<16x128xf32>
    %17 = arith.addf %15, %16 : vector<16x128xf32>
    %cst_15 = arith.constant 0.000000e+00 : f32
    %18 = vector.broadcast %cst_15 : f32 to vector<16x128xf32>
    %19 = arith.maximumf %17, %18 : vector<16x128xf32>
    %20 = arith.addf %19, %10 : vector<16x128xf32>
    %c0_16 = arith.constant 0 : index
    %c0_17 = arith.constant 0 : index
    %21 = vector.load %arg6[%c0_16, %c0_17] : memref<128x128xf32, #tpu.memory_space<vmem>>, vector<128x128xf32>
    %c0_18 = arith.constant 0 : index
    %c0_19 = arith.constant 0 : index
    %22 = vector.load %arg7[%c0_18, %c0_19] : memref<1x128xf32, #tpu.memory_space<vmem>>, vector<1x128xf32>
    %cst_20 = arith.constant dense<0.000000e+00> : vector<16x128xf32>
    %23 = tpu.matmul %20, %21, %cst_20 {dimension_numbers = #tpu.dot_dimension_numbers<[1], [0], [0], [1], [0, 0, 1, 1], [], []>} : vector<16x128xf32>, vector<128x128xf32>, vector<16x128xf32> -> vector<16x128xf32>
    %24 = arith.truncf %23 : vector<16x128xf32> to vector<16x128xbf16>
    %cst_21 = arith.constant dense<0.000000e+00> : vector<16x128xf32>
    %25 = tpu.matmul %0, %24, %cst_21 {dimension_numbers = #tpu.dot_dimension_numbers<[1], [0], [0], [1], [0, 0, 1, 1], [], []>} : vector<16x16xbf16>, vector<16x128xbf16>, vector<16x128xf32> -> vector<16x128xf32>
    %26 = vector.broadcast %22 : vector<1x128xf32> to vector<16x128xf32>
    %27 = arith.addf %25, %26 : vector<16x128xf32>
    %c0_22 = arith.constant 0 : index
    %c0_23 = arith.constant 0 : index
    %28 = vector.load %arg8[%c0_22, %c0_23] : memref<16x128xf32, #tpu.memory_space<vmem>>, vector<16x128xf32>
    tpu.vector_store %arg8[%c0_22, %c0_23], %27 {strides = array<i32>} : memref<16x128xf32, #tpu.memory_space<vmem>>, vector<16x128xf32>,
    return
  }
}

</mosaic_0001>

<llo_original>
// kernel: tpu_custom_call.1
$region0: #{tpu_custom_call.1}
  #allocation0 [shape = 'u32[]', space=smem, size = 0x4, offset = 0x4, fixed_abs, tag = 'smem constant byte address 0x4 - core index']
  #allocation1 [shape = 'u32[72,128]{1,0:T(1,128)}', space=vmem, size = 0x9000, scoped, tag = 'internal scratch']
  %s0 = inlined_call_operand.hbm [shape: bf16[16,16], index: 0, kind: input, shape index: {}]
  %s1 = inlined_call_operand.hbm [shape: f32[16,128], index: 1, kind: input, shape index: {}]
  %s2 = inlined_call_operand.hbm [shape: f32[128,128], index: 2, kind: input, shape index: {}]
  %s3 = inlined_call_operand.vmem [shape: f32[1,128], index: 3, kind: input, shape index: {}]
  %s4 = inlined_call_operand.hbm [shape: f32[128,128], index: 4, kind: input, shape index: {}]
  %s5 = inlined_call_operand.vmem [shape: f32[1,128], index: 5, kind: input, shape index: {}]
  %s6 = inlined_call_operand.hbm [shape: f32[128,128], index: 6, kind: input, shape index: {}]
  %s7 = inlined_call_operand.vmem [shape: f32[1,128], index: 7, kind: input, shape index: {}]
  %s8 = inlined_call_operand.hbm [shape: f32[16,128], index: 8, kind: output, shape index: {}]
  %s9 = sld [smem:[#allocation0]]
  $region62: #{tpu_custom_call.1} parent=0
    _
  %s11 = ssub.s32 1, %s9
  %s12 = scalar_select 0, %s11, %s9
  $region1: #{tpu_custom_call.1} parent=0
    #allocation2 [shape = 'u8[4096]{0}', space=vmem, size = 0x1000, scoped, tag = 'input window, operand 0, single buffered']
    #allocation3 [shape = 's32[1]{0}', space=sflag, size = 0x4, scoped, tag = 'scoped memory for tpu_custom_call.1']
    #allocation4 [shape = 's32[1]{0}', space=sflag, size = 0x4, scoped, tag = 'scoped memory for tpu_custom_call.1']
    #allocation5 [shape = 'u8[8192]{0}', space=vmem, size = 0x2000, scoped, tag = 'input window, operand 1, single buffered']
    #allocation6 [shape = 's32[1]{0}', space=sflag, size = 0x4, scoped, tag = 'scoped memory for tpu_custom_call.1']
    #allocation7 [shape = 'u8[65536]{0}', space=vmem, size = 0x10000, scoped, tag = 'input window, operand 2, single buffered']
    #allocation8 [shape = 'u8[65536]{0}', space=vmem, size = 0x10000, scoped, tag = 'input window, operand 4, single buffered']
    #allocation9 [shape = 's32[1]{0}', space=sflag, size = 0x4, scoped, tag = 'scoped memory for tpu_custom_call.1']
    #allocation10 [shape = 'u8[65536]{0}', space=vmem, size = 0x10000, scoped, tag = 'input window, operand 6, single buffered']
    #allocation11 [shape = 'u8[8192]{0}', space=vmem, size = 0x2000, scoped, tag = 'output window, operand 0, single buffered']
    %13 = vsyncpa [#allocation3], 0
    %14 = vsyncpa [#allocation6], 0
    %15 = vsyncpa [#allocation9], 0
    %16 = vsyncpa [#allocation4], 0
    // Predicated region
    $region2: #{tpu_custom_call.1} parent=1 // pred_check
      _
    $region3: #{tpu_custom_call.1} parent=1 // pred_check_branch
      %18 = sbr.rel (0) target = $region5
    $region4: #{tpu_custom_call.1} parent=1 // pred_region
      %20 = vsyncadd [#allocation3], 0
      %s21 = sshll.u32 %s0, 4
      %s22 = int_to_ptr.hbm [resolvable:$true] %s21
      %s23 = sshll.u32 [#allocation2], 4
      %s24 = int_to_ptr.vmem [resolvable:$true] %s23
      %29 = dma.hbm_to_vmem [thread:$0]  %s22, 128, %s24, [#allocation3], 64, 64, 4
    $region5: #{tpu_custom_call.1} parent=1 // pred_fallthru
      _
    // Predicated region
    $region6: #{tpu_custom_call.1} parent=1 // pred_check
      _
    $region7: #{tpu_custom_call.1} parent=1 // pred_check_branch
      %31 = sbr.rel (0) target = $region9
    $region8: #{tpu_custom_call.1} parent=1 // pred_region
      %33 = vsyncadd [#allocation6], 0
      %s34 = sshll.u32 %s1, 4
      %s35 = int_to_ptr.hbm [resolvable:$true] %s34
      %s36 = sshll.u32 [#allocation5], 4
      %s37 = int_to_ptr.vmem [resolvable:$true] %s36
      %42 = dma.hbm_to_vmem [thread:$0]  %s35, 256, %s37, [#allocation6], 128, 128, 8
    $region9: #{tpu_custom_call.1} parent=1 // pred_fallthru
      _
    // Predicated region
    $region10: #{tpu_custom_call.1} parent=1 // pred_check
      _
    $region11: #{tpu_custom_call.1} parent=1 // pred_check_branch
      %44 = sbr.rel (0) target = $region13
    $region12: #{tpu_custom_call.1} parent=1 // pred_region
      %46 = vsyncadd [#allocation6], 0
      %s47 = sshll.u32 %s2, 4
      %s48 = int_to_ptr.hbm [resolvable:$true] %s47
      %s49 = sshll.u32 [#allocation7], 4
      %s50 = int_to_ptr.vmem [resolvable:$true] %s49
      %55 = dma.hbm_to_vmem [thread:$0]  %s48, 2048, %s50, [#allocation6], 128, 128, 8
    $region13: #{tpu_custom_call.1} parent=1 // pred_fallthru
      _
    // Predicated region
    $region14: #{tpu_custom_call.1} parent=1 // pred_check
      _
    $region15: #{tpu_custom_call.1} parent=1 // pred_check_branch
      %57 = sbr.rel (0) target = $region17
    $region16: #{tpu_custom_call.1} parent=1 // pred_region
      _
    $region17: #{tpu_custom_call.1} parent=1 // pred_fallthru
      _
    // Predicated region
    $region18: #{tpu_custom_call.1} parent=1 // pred_check
      _
    $region19: #{tpu_custom_call.1} parent=1 // pred_check_branch
      %59 = sbr.rel (0) target = $region21
    $region20: #{tpu_custom_call.1} parent=1 // pred_region
      %61 = vsyncadd [#allocation9], 0
      %s62 = sshll.u32 %s4, 4
      %s63 = int_to_ptr.hbm [resolvable:$true] %s62
      %s64 = sshll.u32 [#allocation8], 4
      %s65 = int_to_ptr.vmem [resolvable:$true] %s64
      %70 = dma.hbm_to_vmem [thread:$0]  %s63, 2048, %s65, [#allocation9], 128, 128, 8
    $region21: #{tpu_custom_call.1} parent=1 // pred_fallthru
      _
    // Predicated region
    $region22: #{tpu_custom_call.1} parent=1 // pred_check
      _
    $region23: #{tpu_custom_call.1} parent=1 // pred_check_branch
      %72 = sbr.rel (0) target = $region25
    $region24: #{tpu_custom_call.1} parent=1 // pred_region
      _
    $region25: #{tpu_custom_call.1} parent=1 // pred_fallthru
      _
    // Predicated region
    $region26: #{tpu_custom_call.1} parent=1 // pred_check
      _
    $region27: #{tpu_custom_call.1} parent=1 // pred_check_branch
      %74 = sbr.rel (0) target = $region29
    $region28: #{tpu_custom_call.1} parent=1 // pred_region
      %76 = vsyncadd [#allocation9], 0
      %s77 = sshll.u32 %s6, 4
      %s78 = int_to_ptr.hbm [resolvable:$true] %s77
      %s79 = sshll.u32 [#allocation10], 4
      %s80 = int_to_ptr.vmem [resolvable:$true] %s79
      %85 = dma.hbm_to_vmem [thread:$0]  %s78, 2048, %s80, [#allocation9], 128, 128, 8
    $region29: #{tpu_custom_call.1} parent=1 // pred_fallthru
      _
    // Predicated region
    $region30: #{tpu_custom_call.1} parent=1 // pred_check
      _
    $region31: #{tpu_custom_call.1} parent=1 // pred_check_branch
      %87 = sbr.rel (0) target = $region33
    $region32: #{tpu_custom_call.1} parent=1 // pred_region
      _
    $region33: #{tpu_custom_call.1} parent=1 // pred_fallthru
      _
    // Predicated region
    $region34: #{tpu_custom_call.1} parent=1 // pred_check
      _
    $region35: #{tpu_custom_call.1} parent=1 // pred_check_branch
      %89 = sbr.rel (0) target = $region37
    $region36: #{tpu_custom_call.1} parent=1 // pred_region
      %91 = dma.done [#allocation3], 128
    $region37: #{tpu_custom_call.1} parent=1 // pred_fallthru
      _
    // Predicated region
    $region38: #{tpu_custom_call.1} parent=1 // pred_check
      _
    $region39: #{tpu_custom_call.1} parent=1 // pred_check_branch
      %93 = sbr.rel (0) target = $region41
    $region40: #{tpu_custom_call.1} parent=1 // pred_region
      %95 = dma.done [#allocation6], 256
    $region41: #{tpu_custom_call.1} parent=1 // pred_fallthru
      _
    // Predicated region
    $region42: #{tpu_custom_call.1} parent=1 // pred_check
      _
    $region43: #{tpu_custom_call.1} parent=1 // pred_check_branch
      %97 = sbr.rel (0) target = $region45
    $region44: #{tpu_custom_call.1} parent=1 // pred_region
      %99 = dma.done [#allocation6], 2048
    $region45: #{tpu_custom_call.1} parent=1 // pred_fallthru
      _
    // Predicated region
    $region46: #{tpu_custom_call.1} parent=1 // pred_check
      _
    $region47: #{tpu_custom_call.1} parent=1 // pred_check_branch
      %101 = sbr.rel (0) target = $region49
    $region48: #{tpu_custom_call.1} parent=1 // pred_region
      %103 = dma.done [#allocation9], 2048
    $region49: #{tpu_custom_call.1} parent=1 // pred_fallthru
      _
    // Predicated region
    $region50: #{tpu_custom_call.1} parent=1 // pred_check
      _
    $region51: #{tpu_custom_call.1} parent=1 // pred_check_branch
      %105 = sbr.rel (0) target = $region53
    $region52: #{tpu_custom_call.1} parent=1 // pred_region
      %107 = dma.done [#allocation9], 2048
    $region53: #{tpu_custom_call.1} parent=1 // pred_fallthru
      _
    %v109 = vld [vmem:[#allocation2] sm:$0xf]
    %v110 = vld [vmem:[#allocation2 + $0x4] sm:$0xf]
    %v111 = vld [vmem:[#allocation5] sm:$0xff]
    %v112 = vld [vmem:[#allocation5 + $0x8] sm:$0xff]
    %v113 = vld [vmem:[#allocation7] sm:$0xff]
    %v114 = vld [vmem:[#allocation7 + $0x8] sm:$0xff]
    %v115 = vld [vmem:[#allocation7 + $0x10] sm:$0xff]
    %v116 = vld [vmem:[#allocation7 + $0x18] sm:$0xff]
    %v117 = vld [vmem:[#allocation7 + $0x20] sm:$0xff]
    %v118 = vld [vmem:[#allocation7 + $0x28] sm:$0xff]
    %v119 = vld [vmem:[#allocation7 + $0x30] sm:$0xff]
    %v120 = vld [vmem:[#allocation7 + $0x38] sm:$0xff]
    %v121 = vld [vmem:[#allocation7 + $0x40] sm:$0xff]
    %v122 = vld [vmem:[#allocation7 + $0x48] sm:$0xff]
    %v123 = vld [vmem:[#allocation7 + $0x50] sm:$0xff]
    %v124 = vld [vmem:[#allocation7 + $0x58] sm:$0xff]
    %v125 = vld [vmem:[#allocation7 + $0x60] sm:$0xff]
    %v126 = vld [vmem:[#allocation7 + $0x68] sm:$0xff]
    %v127 = vld [vmem:[#allocation7 + $0x70] sm:$0xff]
    %v128 = vld [vmem:[#allocation7 + $0x78] sm:$0xff]
    %v129 = vld [vmem:[%s3] sm:$0x1]
    %v130 = vpack.c.bf16 %v112, %v111
    %v133 = vunpack.c.l.b16 %v109
    %v134 = vunpack.c.l.b16 %v110
    %v135 = vpack.c.b16 %v134, %v133
    %vm136 = vcmask 130048
    %v138 = vsel %vm136, %v135, 0
    %140 = vmatpush.bf16.msra.mxu0 0
    %141 = vmatpush.bf16.msra.mxu0 0
    %142 = vmatpush.bf16.msra.mxu0 0
    %143 = vmatpush.bf16.msra.mxu0 0
    %144 = vmatpush.bf16.msra.mxu0 0
    %145 = vmatpush.bf16.msra.mxu0 0
    %146 = vmatpush.bf16.msra.mxu0 0
    %147 = vmatpush.bf16.msra.mxu0 %v130
    %148 = vmatmul.bf16.gmra.mxu0 %v138
    %v149 = vpop.f32.mrf.mxu0
    %v150 = vadd.f32 0.0, %v149
    %v151 = vpop.f32.mrf.mxu0
    %v152 = vadd.f32 0.0, %v151
    %153 = vdwg.mxu0
    %v155 = vperm.slane %v129, 0
    %157 = vmatpush.msra.mxu0 %v128
    %158 = vmatpush.msra.mxu0 %v127
    %159 = vmatpush.msra.mxu0 %v126
    %160 = vmatpush.msra.mxu0 %v125
    %161 = vmatpush.msra.mxu0 %v124
    %162 = vmatpush.msra.mxu0 %v123
    %163 = vmatpush.msra.mxu0 %v122
    %164 = vmatpush.msra.mxu0 %v121
    %165 = vmatpush.msra.mxu0 %v120
    %166 = vmatpush.msra.mxu0 %v119
    %167 = vmatpush.msra.mxu0 %v118
    %168 = vmatpush.msra.mxu0 %v117
    %169 = vmatpush.msra.mxu0 %v116
    %170 = vmatpush.msra.mxu0 %v115
    %171 = vmatpush.msra.mxu0 %v114
    %172 = vmatpush.msra.mxu0 %v113
    %173 = vmatmul.f32.gmra.mxu0 %v150
    %v174 = vpop.f32.mrf.mxu0
    %v175 = vadd.f32 %v155, %v174
    %176 = vmatmul.f32.gmra.mxu0 %v152
    %v177 = vpop.f32.mrf.mxu0
    %v178 = vadd.f32 %v155, %v177
    %179 = vdwg.mxu0
    %v180 = vmax.f32 %v175, 0.0
    %v181 = vmax.f32 %v178, 0.0
    %v182 = vld [vmem:[#allocation8] sm:$0xff]
    %v183 = vld [vmem:[#allocation8 + $0x8] sm:$0xff]
    %v184 = vld [vmem:[#allocation8 + $0x10] sm:$0xff]
    %v185 = vld [vmem:[#allocation8 + $0x18] sm:$0xff]
    %v186 = vld [vmem:[#allocation8 + $0x20] sm:$0xff]
    %v187 = vld [vmem:[#allocation8 + $0x28] sm:$0xff]
    %v188 = vld [vmem:[#allocation8 + $0x30] sm:$0xff]
    %v189 = vld [vmem:[#allocation8 + $0x38] sm:$0xff]
    %v190 = vld [vmem:[#allocation8 + $0x40] sm:$0xff]
    %v191 = vld [vmem:[#allocation8 + $0x48] sm:$0xff]
    %v192 = vld [vmem:[#allocation8 + $0x50] sm:$0xff]
    %v193 = vld [vmem:[#allocation8 + $0x58] sm:$0xff]
    %v194 = vld [vmem:[#allocation8 + $0x60] sm:$0xff]
    %v195 = vld [vmem:[#allocation8 + $0x68] sm:$0xff]
    %v196 = vld [vmem:[#allocation8 + $0x70] sm:$0xff]
    %v197 = vld [vmem:[#allocation8 + $0x78] sm:$0xff]
    %v198 = vld [vmem:[%s5] sm:$0x1]
    %199 = vmatpush.msra.mxu0 %v197
    %200 = vmatpush.msra.mxu0 %v196
    %201 = vmatpush.msra.mxu0 %v195
    %202 = vmatpush.msra.mxu0 %v194
    %203 = vmatpush.msra.mxu0 %v193
    %204 = vmatpush.msra.mxu0 %v192
    %205 = vmatpush.msra.mxu0 %v191
    %206 = vmatpush.msra.mxu0 %v190
    %207 = vmatpush.msra.mxu0 %v189
    %208 = vmatpush.msra.mxu0 %v188
    %209 = vmatpush.msra.mxu0 %v187
    %210 = vmatpush.msra.mxu0 %v186
    %211 = vmatpush.msra.mxu0 %v185
    %212 = vmatpush.msra.mxu0 %v184
    %213 = vmatpush.msra.mxu0 %v183
    %214 = vmatpush.msra.mxu0 %v182
    %215 = vmatmul.f32.gmra.mxu0 %v180
    %v216 = vpop.f32.mrf.mxu0
    %v217 = vadd.f32 0.0, %v216
    %218 = vmatmul.f32.gmra.mxu0 %v181
    %v219 = vpop.f32.mrf.mxu0
    %v220 = vadd.f32 0.0, %v219
    %221 = vdwg.mxu0
    %v222 = vpack.c.bf16 %v220, %v217
    %v224 = vperm.slane %v198, 0
    %226 = vmatpush.bf16.msra.mxu0 0
    %227 = vmatpush.bf16.msra.mxu0 0
    %228 = vmatpush.bf16.msra.mxu0 0
    %229 = vmatpush.bf16.msra.mxu0 0
    %230 = vmatpush.bf16.msra.mxu0 0
    %231 = vmatpush.bf16.msra.mxu0 0
    %232 = vmatpush.bf16.msra.mxu0 0
    %233 = vmatpush.bf16.msra.mxu0 %v222
    %234 = vmatmul.bf16.gmra.mxu0 %v138
    %v235 = vpop.f32.mrf.mxu0
    %v236 = vadd.f32 %v224, %v235
    %v237 = vpop.f32.mrf.mxu0
    %v238 = vadd.f32 %v224, %v237
    %239 = vdwg.mxu0
    %v240 = vmax.f32 %v236, 0.0
    %v241 = vmax.f32 %v238, 0.0
    %v242 = vadd.f32 %v240, %v180
    %v243 = vadd.f32 %v241, %v181
    %v244 = vld [vmem:[#allocation10] sm:$0xff]
    %v245 = vld [vmem:[#allocation10 + $0x8] sm:$0xff]
    %v246 = vld [vmem:[#allocation10 + $0x10] sm:$0xff]
    %v247 = vld [vmem:[#allocation10 + $0x18] sm:$0xff]
    %v248 = vld [vmem:[#allocation10 + $0x20] sm:$0xff]
    %v249 = vld [vmem:[#allocation10 + $0x28] sm:$0xff]
    %v250 = vld [vmem:[#allocation10 + $0x30] sm:$0xff]
    %v251 = vld [vmem:[#allocation10 + $0x38] sm:$0xff]
    %v252 = vld [vmem:[#allocation10 + $0x40] sm:$0xff]
    %v253 = vld [vmem:[#allocation10 + $0x48] sm:$0xff]
    %v254 = vld [vmem:[#allocation10 + $0x50] sm:$0xff]
    %v255 = vld [vmem:[#allocation10 + $0x58] sm:$0xff]
    %v256 = vld [vmem:[#allocation10 + $0x60] sm:$0xff]
    %v257 = vld [vmem:[#allocation10 + $0x68] sm:$0xff]
    %v258 = vld [vmem:[#allocation10 + $0x70] sm:$0xff]
    %v259 = vld [vmem:[#allocation10 + $0x78] sm:$0xff]
    %v260 = vld [vmem:[%s7] sm:$0x1]
    %261 = vmatpush.msra.mxu0 %v259
    %262 = vmatpush.msra.mxu0 %v258
    %263 = vmatpush.msra.mxu0 %v257
    %264 = vmatpush.msra.mxu0 %v256
    %265 = vmatpush.msra.mxu0 %v255
    %266 = vmatpush.msra.mxu0 %v254
    %267 = vmatpush.msra.mxu0 %v253
    %268 = vmatpush.msra.mxu0 %v252
    %269 = vmatpush.msra.mxu0 %v251
    %270 = vmatpush.msra.mxu0 %v250
    %271 = vmatpush.msra.mxu0 %v249
    %272 = vmatpush.msra.mxu0 %v248
    %273 = vmatpush.msra.mxu0 %v247
    %274 = vmatpush.msra.mxu0 %v246
    %275 = vmatpush.msra.mxu0 %v245
    %276 = vmatpush.msra.mxu0 %v244
    %277 = vmatmul.f32.gmra.mxu0 %v242
    %v278 = vpop.f32.mrf.mxu0
    %v279 = vadd.f32 0.0, %v278
    %280 = vmatmul.f32.gmra.mxu0 %v243
    %v281 = vpop.f32.mrf.mxu0
    %v282 = vadd.f32 0.0, %v281
    %283 = vdwg.mxu0
    %v284 = vpack.c.bf16 %v282, %v279
    %v286 = vperm.slane %v260, 0
    %288 = vmatpush.bf16.msra.mxu0 0
    %289 = vmatpush.bf16.msra.mxu0 0
    %290 = vmatpush.bf16.msra.mxu0 0
    %291 = vmatpush.bf16.msra.mxu0 0
    %292 = vmatpush.bf16.msra.mxu0 0
    %293 = vmatpush.bf16.msra.mxu0 0
    %294 = vmatpush.bf16.msra.mxu0 0
    %295 = vmatpush.bf16.msra.mxu0 %v284
    %296 = vmatmul.bf16.gmra.mxu0 %v138
    %v297 = vpop.f32.mrf.mxu0
    %v298 = vadd.f32 %v286, %v297
    %v299 = vpop.f32.mrf.mxu0
    %v300 = vadd.f32 %v286, %v299
    %301 = vdwg.mxu0
    %302 = vst [vmem:[#allocation11] sm:$0xff] %v298
    %303 = vst [vmem:[#allocation11 + $0x8] sm:$0xff] %v300
    // Predicated region
    $region54: #{tpu_custom_call.1} parent=1 // pred_check
      _
    $region55: #{tpu_custom_call.1} parent=1 // pred_check_branch
      %305 = sbr.rel (0) target = $region57
    $region56: #{tpu_custom_call.1} parent=1 // pred_region
      %307 = vsyncadd [#allocation4], 0
      %s308 = sshll.u32 [#allocation11], 4
      %s309 = int_to_ptr.vmem [resolvable:$true] %s308
      %s310 = sshll.u32 %s8, 4
      %s311 = int_to_ptr.hbm [resolvable:$true] %s310
      %316 = dma.vmem_to_hbm [thread:$0]  %s309, 256, %s311, [#allocation4], 128, 128, 8
    $region57: #{tpu_custom_call.1} parent=1 // pred_fallthru
      _
    // Predicated region
    $region58: #{tpu_custom_call.1} parent=1 // pred_check
      _
    $region59: #{tpu_custom_call.1} parent=1 // pred_check_branch
      %318 = sbr.rel (0) target = $region61
    $region60: #{tpu_custom_call.1} parent=1 // pred_region
      %320 = dma.done [#allocation4], 256
    $region61: #{tpu_custom_call.1} parent=1 // pred_fallthru
      _
    %321 = vsyncpa [#allocation3], 1
    %322 = vsyncpa [#allocation6], 1
    %323 = vsyncpa [#allocation9], 1
    %324 = vsyncpa [#allocation4], 1

</llo_original>
